<compile_context>
chip_gen: v5e
topology: v5e:2x2
jax: 0.10.0
libtpu: 0.0.40
codegen_flags: <defaults>
</compile_context>

<pallas_src>
import jax
import jax.numpy as jnp
import numpy as np
from jax.experimental import pallas as pl
from jax.experimental.pallas import tpu as pltpu

# ---- module hyper-parameters (small, consistent with the forward pass) ----
B = 2              # batch
C = 8              # sequence length
D = 32             # model_dim
V = 128            # vocab_size (multiple of 128 -> lane-dense output store)
EPS = 1e-5         # RMSNorm eps
N = B * C          # flattened row count

# dot_general dimension numbers: contract dim 1 of lhs with dim 1 of rhs
# (rhs is in torch nn.Linear (out, in) layout -> result is (rows, out)).
_DN = (((1,), (1,)), ((), ()))


def context_head_kernel(x_ref, g_ref, win_ref, wout_ref, o_ref):
    x = x_ref[...]          # (N, D)  f32
    g = g_ref[...]          # (1, D)  RMSNorm weight (broadcast over rows)
    w_in = win_ref[...]     # (D, D)  torch layout (out, in)
    w_out = wout_ref[...]   # (V, D)  torch layout (out, in)

    # RMSNorm: x * rsqrt(mean(x^2, -1) + eps) * gamma
    ms = jnp.mean(x * x, axis=-1, keepdims=True)            # (N, 1)
    xn = x * jax.lax.rsqrt(ms + EPS) * g                     # (N, D)

    # proj_in + SiLU + residual  (contract against (out,in) layout directly)
    h = jax.lax.dot_general(xn, w_in, _DN,
                            preferred_element_type=jnp.float32)   # (N, D)
    y = xn + h * jax.nn.sigmoid(h)                                 # silu(h) = h*sigmoid(h)

    # proj_out -> lane-dense (N, V) store
    o_ref[...] = jax.lax.dot_general(y, w_out, _DN,
                                     preferred_element_type=jnp.float32)
    # TODO(synk): at real scale (N >= 128 rows, V = real vocab) add a
    # "parallel" row grid axis, tile V with a v7x-aware VMEM budget, and cast
    # the dot operands to bf16; pointless at this toy size.


def context_head(x, gamma, w_in, w_out):
    """Pallas wrapper.

    x:     (B, C, D) float32
    gamma: (D,)      RMSNorm weight
    w_in:  (D, D)    torch nn.Linear layout (out_features, in_features)
    w_out: (V, D)    torch nn.Linear layout (out_features, in_features)
    returns (B, C, V) float32
    """
    xf = x.reshape(N, D)          # free row-major reshape
    g2 = gamma.reshape(1, D)

    vmem = pl.BlockSpec(memory_space=pltpu.MemorySpace.VMEM)
    out = pl.pallas_call(
        context_head_kernel,
        out_shape=jax.ShapeDtypeStruct((N, V), jnp.float32),
        in_specs=[vmem, vmem, vmem, vmem],
        out_specs=vmem,
    )(xf, g2, w_in, w_out)
    return out.reshape(B, C, V)


# ---- pure-JAX reference matching the PyTorch module exactly ----
def reference(x, gamma, w_in, w_out):
    xf = x.astype(jnp.float32)
    ms = jnp.mean(xf * xf, axis=-1, keepdims=True)
    xn = xf * jax.lax.rsqrt(ms + EPS) * gamma
    h = xn @ w_in.T
    y = xn + h * jax.nn.sigmoid(h)
    return y @ w_out.T


if __name__ == "__main__":
    key = jax.random.PRNGKey(0)
    kx, kg, ki, ko = jax.random.split(key, 4)

    x = jax.random.normal(kx, (B, C, D), jnp.float32)

    # _init_weights: normal(mean=0, std=0.02) on all parameters (incl. RMSNorm weight)
    gamma = 0.02 * jax.random.normal(kg, (D,), jnp.float32)
    w_in = 0.02 * jax.random.normal(ki, (D, D), jnp.float32)    # (out, in)
    w_out = 0.02 * jax.random.normal(ko, (V, D), jnp.float32)   # (out, in)

    out = context_head(x, gamma, w_in, w_out)
    out = jax.block_until_ready(out)

    ref = reference(x, gamma, w_in, w_out)
    np.testing.assert_allclose(np.asarray(out), np.asarray(ref),
                               rtol=1e-5, atol=1e-5)

    print("KERNEL_OK")
</pallas_src>

<mosaic_0001>
module attributes {stable_mosaic.version = 11 : i64} {
  func.func @context_head_kernel(%arg0: memref<16x32xf32, #tpu.memory_space<vmem>>, %arg1: memref<1x32xf32, #tpu.memory_space<vmem>>, %arg2: memref<32x32xf32, #tpu.memory_space<vmem>>, %arg3: memref<128x32xf32, #tpu.memory_space<vmem>>, %arg4: memref<16x128xf32, #tpu.memory_space<vmem>>) attributes {dimension_semantics = [], scalar_prefetch = 0 : i64, scratch_operands = 0 : i64, tpu.core_type = #tpu.core_type<tc>} {
    %c0 = arith.constant 0 : index
    %c0_0 = arith.constant 0 : index
    %0 = vector.load %arg0[%c0, %c0_0] : memref<16x32xf32, #tpu.memory_space<vmem>>, vector<16x32xf32>
    %c0_1 = arith.constant 0 : index
    %c0_2 = arith.constant 0 : index
    %1 = vector.load %arg1[%c0_1, %c0_2] : memref<1x32xf32, #tpu.memory_space<vmem>>, vector<1x32xf32>
    %c0_3 = arith.constant 0 : index
    %c0_4 = arith.constant 0 : index
    %2 = vector.load %arg2[%c0_3, %c0_4] : memref<32x32xf32, #tpu.memory_space<vmem>>, vector<32x32xf32>
    %c0_5 = arith.constant 0 : index
    %c0_6 = arith.constant 0 : index
    %3 = vector.load %arg3[%c0_5, %c0_6] : memref<128x32xf32, #tpu.memory_space<vmem>>, vector<128x32xf32>
    %4 = arith.mulf %0, %0 : vector<16x32xf32>
    %cst = arith.constant dense<0.000000e+00> : vector<16xf32>
    %5 = vector.multi_reduction <add>, %4, %cst [1] : vector<16x32xf32> to vector<16xf32>
    %6 = vector.shape_cast %5 : vector<16xf32> to vector<16x1xf32>
    %cst_7 = arith.constant 3.200000e+01 : f32
    %7 = vector.broadcast %cst_7 : f32 to vector<16x1xf32>
    %8 = arith.divf %6, %7 : vector<16x1xf32>
    %cst_8 = arith.constant 9.99999974E-6 : f32
    %9 = vector.broadcast %cst_8 : f32 to vector<16x1xf32>
    %10 = arith.addf %8, %9 : vector<16x1xf32>
    %11 = math.rsqrt %10 : vector<16x1xf32>
    %12 = vector.broadcast %11 : vector<16x1xf32> to vector<16x32xf32>
    %13 = arith.mulf %0, %12 : vector<16x32xf32>
    %14 = vector.broadcast %1 : vector<1x32xf32> to vector<16x32xf32>
    %15 = arith.mulf %13, %14 : vector<16x32xf32>
    %cst_9 = arith.constant dense<0.000000e+00> : vector<16x32xf32>
    %16 = tpu.matmul %15, %2, %cst_9 {dimension_numbers = #tpu.dot_dimension_numbers<[1], [1], [0], [0], [0, 0, 1, 0], [], []>} : vector<16x32xf32>, vector<32x32xf32>, vector<16x32xf32> -> vector<16x32xf32>
    %17 = arith.negf %16 : vector<16x32xf32>
    %18 = math.exp %17 : vector<16x32xf32>
    %cst_10 = arith.constant 1.000000e+00 : f32
    %19 = vector.broadcast %cst_10 : f32 to vector<16x32xf32>
    %20 = arith.addf %19, %18 : vector<16x32xf32>
    %21 = arith.divf %19, %20 : vector<16x32xf32>
    %22 = arith.mulf %16, %21 : vector<16x32xf32>
    %23 = arith.addf %15, %22 : vector<16x32xf32>
    %cst_11 = arith.constant dense<0.000000e+00> : vector<16x128xf32>
    %24 = tpu.matmul %23, %3, %cst_11 {dimension_numbers = #tpu.dot_dimension_numbers<[1], [1], [0], [0], [0, 0, 1, 0], [], []>} : vector<16x32xf32>, vector<128x32xf32>, vector<16x128xf32> -> vector<16x128xf32>
    %c0_12 = arith.constant 0 : index
    %c0_13 = arith.constant 0 : index
    %25 = vector.load %arg4[%c0_12, %c0_13] : memref<16x128xf32, #tpu.memory_space<vmem>>, vector<16x128xf32>
    tpu.vector_store %arg4[%c0_12, %c0_13], %24 {strides = array<i32>} : memref<16x128xf32, #tpu.memory_space<vmem>>, vector<16x128xf32>,
    return
  }
}

</mosaic_0001>

<llo_original>
// kernel: tpu_custom_call.1
$region0: #{tpu_custom_call.1}
  #allocation0 [shape = 'u32[]', space=smem, size = 0x4, offset = 0x4, fixed_abs, tag = 'smem constant byte address 0x4 - core index']
  #allocation1 [shape = 'u32[72,128]{1,0:T(1,128)}', space=vmem, size = 0x9000, scoped, tag = 'internal scratch']
  %s0 = inlined_call_operand.vmem [shape: f32[16,32], index: 0, kind: input, shape index: {}]
  %s1 = inlined_call_operand.vmem [shape: f32[1,32], index: 1, kind: input, shape index: {}]
  %s2 = inlined_call_operand.vmem [shape: f32[32,32], index: 2, kind: input, shape index: {}]
  %s3 = inlined_call_operand.vmem [shape: f32[128,32], index: 3, kind: input, shape index: {}]
  %s4 = inlined_call_operand.hbm [shape: f32[16,128], index: 4, kind: output, shape index: {}]
  %s5 = sld [smem:[#allocation0]]
  $region26: #{tpu_custom_call.1} parent=0
    _
  %s7 = ssub.s32 1, %s5
  %s8 = scalar_select 0, %s7, %s5
  $region1: #{tpu_custom_call.1} parent=0
    #allocation2 [shape = 'u8[8192]{0}', space=vmem, size = 0x2000, scoped, tag = 'output window, operand 0, single buffered']
    #allocation3 [shape = 's32[1]{0}', space=sflag, size = 0x4, scoped, tag = 'scoped memory for tpu_custom_call.1']
    %9 = vsyncpa [#allocation3], 0
    // Predicated region
    $region2: #{tpu_custom_call.1} parent=1 // pred_check
      _
    $region3: #{tpu_custom_call.1} parent=1 // pred_check_branch
      %11 = sbr.rel (0) target = $region5
    $region4: #{tpu_custom_call.1} parent=1 // pred_region
      _
    $region5: #{tpu_custom_call.1} parent=1 // pred_fallthru
      _
    // Predicated region
    $region6: #{tpu_custom_call.1} parent=1 // pred_check
      _
    $region7: #{tpu_custom_call.1} parent=1 // pred_check_branch
      %13 = sbr.rel (0) target = $region9
    $region8: #{tpu_custom_call.1} parent=1 // pred_region
      _
    $region9: #{tpu_custom_call.1} parent=1 // pred_fallthru
      _
    // Predicated region
    $region10: #{tpu_custom_call.1} parent=1 // pred_check
      _
    $region11: #{tpu_custom_call.1} parent=1 // pred_check_branch
      %15 = sbr.rel (0) target = $region13
    $region12: #{tpu_custom_call.1} parent=1 // pred_region
      _
    $region13: #{tpu_custom_call.1} parent=1 // pred_fallthru
      _
    // Predicated region
    $region14: #{tpu_custom_call.1} parent=1 // pred_check
      _
    $region15: #{tpu_custom_call.1} parent=1 // pred_check_branch
      %17 = sbr.rel (0) target = $region17
    $region16: #{tpu_custom_call.1} parent=1 // pred_region
      _
    $region17: #{tpu_custom_call.1} parent=1 // pred_fallthru
      _
    %v18 = vld [vmem:[%s0] sm:$0xff]
    %v19 = vld [vmem:[%s0 + $0x8] sm:$0xff]
    %v20 = vld [vmem:[%s1] sm:$0x1]
    %v21 = vld [vmem:[%s2] sm:$0xff]
    %v22 = vld [vmem:[%s2 + $0x8] sm:$0xff]
    %v23 = vld [vmem:[%s2 + $0x10] sm:$0xff]
    %v24 = vld [vmem:[%s2 + $0x18] sm:$0xff]
    %v25 = vld [vmem:[%s3] sm:$0xff]
    %v26 = vld [vmem:[%s3 + $0x8] sm:$0xff]
    %v27 = vld [vmem:[%s3 + $0x10] sm:$0xff]
    %v28 = vld [vmem:[%s3 + $0x18] sm:$0xff]
    %v29 = vld [vmem:[%s3 + $0x20] sm:$0xff]
    %v30 = vld [vmem:[%s3 + $0x28] sm:$0xff]
    %v31 = vld [vmem:[%s3 + $0x30] sm:$0xff]
    %v32 = vld [vmem:[%s3 + $0x38] sm:$0xff]
    %v33 = vld [vmem:[%s3 + $0x40] sm:$0xff]
    %v34 = vld [vmem:[%s3 + $0x48] sm:$0xff]
    %v35 = vld [vmem:[%s3 + $0x50] sm:$0xff]
    %v36 = vld [vmem:[%s3 + $0x58] sm:$0xff]
    %v37 = vld [vmem:[%s3 + $0x60] sm:$0xff]
    %v38 = vld [vmem:[%s3 + $0x68] sm:$0xff]
    %v39 = vld [vmem:[%s3 + $0x70] sm:$0xff]
    %v40 = vld [vmem:[%s3 + $0x78] sm:$0xff]
    %v41 = vmul.f32 %v18, %v18
    %v42 = vmul.f32 %v19, %v19
    %vm43 = vcmask 261120
    %v44 = vsel %vm43, %v41, 0.0
    %45 = vadd.xlane.f32.xlu0 %v44
    %v46 = vpop.xlane.xlu0 %45
    %v47 = vsel %vm43, %v42, 0.0
    %48 = vadd.xlane.f32.xlu0 %v47
    %v49 = vpop.xlane.xlu0 %48
    %v50 = vrcp.pop 32.0
    %v51 = vmul.f32 32.0, %v50
    %v52 = vsub.f32 1.0, %v51
    %v53 = vmul.f32 %v50, %v52
    %v54 = vadd.f32 %v50, %v53
    %vm55 = vweird.f32 %v50
    %v56 = vsel %vm55, %v50, %v54
    %v57 = vmul.f32 %v46, %v56
    %v58 = vmul.f32 %v49, %v56
    %v59 = vadd.f32 %v57, 1e-05
    %v60 = vadd.f32 %v58, 1e-05
    %v61 = vrsqrt.pop %v59
    %v62 = vmul.f32 %v61, %v59
    %v63 = vmul.f32 %v62, %v61
    %v64 = vmul.f32 0.5, %v63
    %v65 = vsub.f32 1.5, %v64
    %v66 = vmul.f32 %v61, %v65
    %vm67 = vweird.f32 %v59
    %vm68 = vweird.f32 %v61
    %vm69 = vmor %vm67, %vm68
    %v70 = vsel %vm69, %v61, %v66
    %v71 = vrsqrt.pop %v60
    %v72 = vmul.f32 %v71, %v60
    %v73 = vmul.f32 %v72, %v71
    %v74 = vmul.f32 0.5, %v73
    %v75 = vsub.f32 1.5, %v74
    %v76 = vmul.f32 %v71, %v75
    %vm77 = vweird.f32 %v60
    %vm78 = vweird.f32 %v71
    %vm79 = vmor %vm77, %vm78
    %v80 = vsel %vm79, %v71, %v76
    %v81 = vmul.f32 %v18, %v70
    %v82 = vmul.f32 %v19, %v80
    %v84 = vperm.slane %v20, 0
    %v86 = vmul.f32 %v81, %v84
    %v87 = vmul.f32 %v82, %v84
    %v89 = vsel %vm43, %v86, 0
    %v92 = vsel %vm43, %v87, 0
    %v95 = vsel %vm43, %v21, 0
    %v98 = vsel %vm43, %v22, 0
    %v101 = vsel %vm43, %v23, 0
    %v104 = vsel %vm43, %v24, 0
    %106 = vmatpush.xpose.msra.mxu0 0.0
    %107 = vmatpush.xpose.msra.mxu0 0.0
    %108 = vmatpush.xpose.msra.mxu0 0.0
    %109 = vmatpush.xpose.msra.mxu0 0.0
    %110 = vmatpush.xpose.msra.mxu0 0.0
    %111 = vmatpush.xpose.msra.mxu0 0.0
    %112 = vmatpush.xpose.msra.mxu0 0.0
    %113 = vmatpush.xpose.msra.mxu0 0.0
    %114 = vmatpush.xpose.msra.mxu0 0.0
    %115 = vmatpush.xpose.msra.mxu0 0.0
    %116 = vmatpush.xpose.msra.mxu0 0.0
    %117 = vmatpush.xpose.msra.mxu0 0.0
    %118 = vmatpush.xpose.msra.mxu0 %v104
    %119 = vmatpush.xpose.msra.mxu0 %v101
    %120 = vmatpush.xpose.msra.mxu0 %v98
    %121 = vmatpush.xpose.msra.mxu0 %v95
    %122 = vmatmul.f32.gmra.mxu0 %v89
    %v123 = vpop.f32.mrf.mxu0
    %v124 = vadd.f32 0.0, %v123
    %125 = vmatmul.f32.gmra.mxu0 %v92
    %v126 = vpop.f32.mrf.mxu0
    %v127 = vadd.f32 0.0, %v126
    %128 = vdwg.mxu0
    %v129 = vxor.u32 %v124, 2147483648
    %v130 = vxor.u32 %v127, 2147483648
    %v131 = vmul.f32 %v129, 1.442695
    %v132 = vpow.pop %v131
    %v133 = vmul.f32 %v130, 1.442695
    %v134 = vpow.pop %v133
    %v135 = vadd.f32 %v132, 1.0
    %v136 = vadd.f32 %v134, 1.0
    %v137 = vrcp.pop %v135
    %v138 = vmul.f32 %v135, %v137
    %v139 = vsub.f32 1.0, %v138
    %v140 = vmul.f32 %v137, %v139
    %v141 = vadd.f32 %v137, %v140
    %vm142 = vweird.f32 %v135
    %vm143 = vweird.f32 %v137
    %vm144 = vmor %vm142, %vm143
    %v145 = vsel %vm144, %v137, %v141
    %v146 = vand.u32 2147483647, %v135
    %vm147 = vcmp.eq.f32.partialorder %v146, 8.507059e+37
    %v148 = vand.u32 %v135, 2147483648
    %v149 = vor.u32 1.1754944e-38, %v148
    %v150 = vsel %vm147, %v149, %v145
    %v151 = vmul.f32 1.0, %v150
    %v152 = vrcp.pop %v136
    %v153 = vmul.f32 %v136, %v152
    %v154 = vsub.f32 1.0, %v153
    %v155 = vmul.f32 %v152, %v154
    %v156 = vadd.f32 %v152, %v155
    %vm157 = vweird.f32 %v136
    %vm158 = vweird.f32 %v152
    %vm159 = vmor %vm157, %vm158
    %v160 = vsel %vm159, %v152, %v156
    %v161 = vand.u32 2147483647, %v136
    %vm162 = vcmp.eq.f32.partialorder %v161, 8.507059e+37
    %v163 = vand.u32 %v136, 2147483648
    %v164 = vor.u32 1.1754944e-38, %v163
    %v165 = vsel %vm162, %v164, %v160
    %v166 = vmul.f32 1.0, %v165
    %v167 = vmul.f32 %v124, %v151
    %v168 = vmul.f32 %v127, %v166
    %v169 = vadd.f32 %v86, %v167
    %v170 = vadd.f32 %v87, %v168
    %v172 = vsel %vm43, %v169, 0
    %v175 = vsel %vm43, %v170, 0
    %v178 = vsel %vm43, %v25, 0
    %v181 = vsel %vm43, %v26, 0
    %v184 = vsel %vm43, %v27, 0
    %v187 = vsel %vm43, %v28, 0
    %v190 = vsel %vm43, %v29, 0
    %v193 = vsel %vm43, %v30, 0
    %v196 = vsel %vm43, %v31, 0
    %v199 = vsel %vm43, %v32, 0
    %v202 = vsel %vm43, %v33, 0
    %v205 = vsel %vm43, %v34, 0
    %v208 = vsel %vm43, %v35, 0
    %v211 = vsel %vm43, %v36, 0
    %v214 = vsel %vm43, %v37, 0
    %v217 = vsel %vm43, %v38, 0
    %v220 = vsel %vm43, %v39, 0
    %v223 = vsel %vm43, %v40, 0
    %225 = vmatpush.xpose.msra.mxu0 %v223
    %226 = vmatpush.xpose.msra.mxu0 %v220
    %227 = vmatpush.xpose.msra.mxu0 %v217
    %228 = vmatpush.xpose.msra.mxu0 %v214
    %229 = vmatpush.xpose.msra.mxu0 %v211
    %230 = vmatpush.xpose.msra.mxu0 %v208
    %231 = vmatpush.xpose.msra.mxu0 %v205
    %232 = vmatpush.xpose.msra.mxu0 %v202
    %233 = vmatpush.xpose.msra.mxu0 %v199
    %234 = vmatpush.xpose.msra.mxu0 %v196
    %235 = vmatpush.xpose.msra.mxu0 %v193
    %236 = vmatpush.xpose.msra.mxu0 %v190
    %237 = vmatpush.xpose.msra.mxu0 %v187
    %238 = vmatpush.xpose.msra.mxu0 %v184
    %239 = vmatpush.xpose.msra.mxu0 %v181
    %240 = vmatpush.xpose.msra.mxu0 %v178
    %241 = vmatmul.f32.gmra.mxu0 %v172
    %v242 = vpop.f32.mrf.mxu0
    %v243 = vadd.f32 0.0, %v242
    %244 = vmatmul.f32.gmra.mxu0 %v175
    %v245 = vpop.f32.mrf.mxu0
    %v246 = vadd.f32 0.0, %v245
    %247 = vdwg.mxu0
    %248 = vst [vmem:[#allocation2] sm:$0xff] %v243
    %249 = vst [vmem:[#allocation2 + $0x8] sm:$0xff] %v246
    // Predicated region
    $region18: #{tpu_custom_call.1} parent=1 // pred_check
      _
    $region19: #{tpu_custom_call.1} parent=1 // pred_check_branch
      %251 = sbr.rel (0) target = $region21
    $region20: #{tpu_custom_call.1} parent=1 // pred_region
      %253 = vsyncadd [#allocation3], 0
      %s254 = sshll.u32 [#allocation2], 4
      %s255 = int_to_ptr.vmem [resolvable:$true] %s254
      %s256 = sshll.u32 %s4, 4
      %s257 = int_to_ptr.hbm [resolvable:$true] %s256
      %262 = dma.vmem_to_hbm [thread:$0]  %s255, 256, %s257, [#allocation3], 128, 128, 8
    $region21: #{tpu_custom_call.1} parent=1 // pred_fallthru
      _
    // Predicated region
    $region22: #{tpu_custom_call.1} parent=1 // pred_check
      _
    $region23: #{tpu_custom_call.1} parent=1 // pred_check_branch
      %264 = sbr.rel (0) target = $region25
    $region24: #{tpu_custom_call.1} parent=1 // pred_region
      %266 = dma.done [#allocation3], 256
    $region25: #{tpu_custom_call.1} parent=1 // pred_fallthru
      _
    %267 = vsyncpa [#allocation3], 1

</llo_original>
